<compile_context>
chip_gen: v7x
topology: tpu7x:2x2x1
jax: 0.10.0
libtpu: 0.0.40
codegen_flags: <defaults>
</compile_context>

<pallas_src>
import functools

import jax
import jax.numpy as jnp
from jax.experimental import pallas as pl
from jax.experimental.pallas import tpu as pltpu


# ----------------------------------------------------------------------------
# Pallas kernel: one tile of TM voxels, all 8 upsample offsets at once.
# ----------------------------------------------------------------------------
def _deup_cat_kernel(x_ref, prev_ref, wx_ref, wp_ref, b_ref, o_ref):
    # Layouts (channels-major, voxels-minor = lane-dense):
    #   x_ref   : (Cin,      TM)   low-res input voxels
    #   prev_ref: (8*Cout,   TM)   skip tensor, offset-stacked channels
    #   wx_ref  : (8*Cout, Cin)    stacked transposed fused weight W1@W2[k]@W3_bot
    #   wp_ref  : (8*Cout, 8*Cout) block-diag(W3_top^T)
    #   b_ref   : (8*Cout, 1)      fused bias (f32)
    #   o_ref   : (8*Cout,   TM)
    acc = jnp.dot(wp_ref[...], prev_ref[...], preferred_element_type=jnp.float32)
    acc = acc + jnp.dot(wx_ref[...], x_ref[...], preferred_element_type=jnp.float32)
    o_ref[...] = (acc + b_ref[...]).astype(o_ref.dtype)


def deup_cat_forward(x, prev, params, *, tile_m=4096, compute_dtype=jnp.bfloat16):
    """x: [N, Cin, D, H, W], prev: [N, Cout, 2D, 2H, 2W] -> [N, Cout, 2D, 2H, 2W]."""
    w1, b1, w2, b2, w3, b3 = (params[k] for k in
                              ("w1", "b1", "w2", "b2", "w3", "b3"))
    N, Cin, D, H, W = x.shape
    Cout = w1.shape[0]
    M = N * D * H * W
    K8 = 8 * Cout

    # ---- offline weight fusion (tiny, f32) ----------------------------------
    W1_mat = jnp.transpose(w1[:, :, 0, 0, 0])                       # (Cin, Cout)
    # ConvTranspose3d weight: (Cout_in, Cout_out, 2, 2, 2); flatten offsets.
    W2_all = jnp.transpose(w2.reshape(Cout, Cout, 8), (2, 0, 1))    # (8, Cin', Cout)
    W3_mat = w3[:, :, 0, 0, 0]                                      # (Cout, 2*Cout)
    W3_topT = W3_mat[:, :Cout]                                      # (Cout_out, Cout_prev)
    W3_bot = jnp.transpose(W3_mat[:, Cout:])                        # (Cout_y, Cout_out)

    # Wfused[k] = W1 @ W2[k] @ W3_bot  -> stacked & transposed: (8*Cout, Cin)
    Wfused = jnp.einsum("ic,kcd,do->kio", W1_mat, W2_all, W3_bot)   # (8, Cin, Cout)
    wx = jnp.transpose(Wfused, (0, 2, 1)).reshape(K8, Cin)

    # block-diagonal W3_top^T acting per offset on the stacked prev channels
    wp = jnp.einsum("kl,oc->kolc", jnp.eye(8, dtype=jnp.float32),
                    W3_topT).reshape(K8, K8)

    # fused bias: ((b1 @ W2[k]) + b2) @ W3_bot + b3, stacked -> (8*Cout, 1)
    b_fused = (jnp.einsum("c,kcd->kd", b1, W2_all) + b2[None, :]) @ W3_bot \
        + b3[None, :]
    b_stacked = b_fused.reshape(K8, 1).astype(jnp.float32)

    # ---- relayout to lane-dense (channels, voxels) --------------------------
    # x: (Cin, M), column index = ((n*D + d)*H + h)*W + w
    x_t = jnp.transpose(x, (1, 0, 2, 3, 4)).reshape(Cin, M)
    # prev[n, c, 2d+kd, 2h+kh, 2w+kw] -> rows (kd, kh, kw, c), cols (n, d, h, w)
    prev_t = prev.reshape(N, Cout, D, 2, H, 2, W, 2)
    prev_t = jnp.transpose(prev_t, (3, 5, 7, 1, 0, 2, 4, 6)).reshape(K8, M)

    # ---- tiling over the voxel axis (pad, no divisibility assert) -----------
    tile_m = max(128, (min(tile_m, pl.cdiv(M, 128) * 128) // 128) * 128)
    M_pad = pl.cdiv(M, tile_m) * tile_m
    if M_pad != M:
        x_t = jnp.pad(x_t, ((0, 0), (0, M_pad - M)))
        prev_t = jnp.pad(prev_t, ((0, 0), (0, M_pad - M)))

    # bf16 streams halve HBM traffic; accumulation stays f32 in the kernel.
    x_t = x_t.astype(compute_dtype)
    prev_t = prev_t.astype(compute_dtype)
    wx = wx.astype(compute_dtype)
    wp = wp.astype(compute_dtype)

    grid = (M_pad // tile_m,)
    out_t = pl.pallas_call(
        _deup_cat_kernel,
        out_shape=jax.ShapeDtypeStruct((K8, M_pad), jnp.float32),
        grid_spec=pltpu.PrefetchScalarGridSpec(
            num_scalar_prefetch=0,
            grid=grid,
            in_specs=[
                pl.BlockSpec((Cin, tile_m), lambda i: (0, i)),   # x columns
                pl.BlockSpec((K8, tile_m), lambda i: (0, i)),    # prev columns
                pl.BlockSpec((K8, Cin), lambda i: (0, 0)),       # fused x-weight
                pl.BlockSpec((K8, K8), lambda i: (0, 0)),        # block-diag prev-weight
                pl.BlockSpec((K8, 1), lambda i: (0, 0)),         # fused bias
            ],
            out_specs=pl.BlockSpec((K8, tile_m), lambda i: (0, i)),
        ),
        compiler_params=pltpu.CompilerParams(
            dimension_semantics=("parallel",)),
    )(x_t, prev_t, wx, wp, b_stacked)

    # ---- back to NCDHW -------------------------------------------------------
    out = out_t[:, :M].reshape(2, 2, 2, Cout, N, D, H, W)
    out = jnp.transpose(out, (4, 3, 5, 0, 6, 1, 7, 2))  # n, c, d, kd, h, kh, w, kw
    return out.reshape(N, Cout, 2 * D, 2 * H, 2 * W)


# ----------------------------------------------------------------------------
# Pure-JAX reference (mirrors the PyTorch forward exactly) for verification.
# ----------------------------------------------------------------------------
def deup_cat_reference(x, prev, params):
    w1, b1, w2, b2, w3, b3 = (params[k] for k in
                              ("w1", "b1", "w2", "b2", "w3", "b3"))
    N, Cin, D, H, W = x.shape
    Cout = w1.shape[0]
    x1 = jnp.einsum("ncdhw,oc->nodhw", x, w1[:, :, 0, 0, 0]) \
        + b1[None, :, None, None, None]
    y = jnp.einsum("ncdhw,coijk->nodihjwk", x1, w2)
    y = y.reshape(N, Cout, 2 * D, 2 * H, 2 * W) + b2[None, :, None, None, None]
    z = jnp.concatenate([prev, y], axis=1)
    out = jnp.einsum("ncdhw,oc->nodhw", z, w3[:, :, 0, 0, 0]) \
        + b3[None, :, None, None, None]
    return out


def init_params(key, in_channels, out_channels):
    """Deterministic synthetic parameters in PyTorch layout."""
    ks = jax.random.split(key, 6)
    s = 0.1
    return {
        "w1": s * jax.random.normal(ks[0], (out_channels, in_channels, 1, 1, 1), jnp.float32),
        "b1": s * jax.random.normal(ks[1], (out_channels,), jnp.float32),
        "w2": s * jax.random.normal(ks[2], (out_channels, out_channels, 2, 2, 2), jnp.float32),
        "b2": s * jax.random.normal(ks[3], (out_channels,), jnp.float32),
        "w3": s * jax.random.normal(ks[4], (out_channels, 2 * out_channels, 1, 1, 1), jnp.float32),
        "b3": s * jax.random.normal(ks[5], (out_channels,), jnp.float32),
    }


if __name__ == "__main__":
    N, Cin, Cout = 2, 16, 8
    D = H = W = 8                       # low-res volume; output is 16^3

    key = jax.random.PRNGKey(0)
    kx, kp, kw = jax.random.split(key, 3)
    x = jax.random.normal(kx, (N, Cin, D, H, W), jnp.float32)
    prev = jax.random.normal(kp, (N, Cout, 2 * D, 2 * H, 2 * W), jnp.float32)
    params = init_params(kw, Cin, Cout)

    ref = jax.block_until_ready(deup_cat_reference(x, prev, params))

    # f32 path: verifies the fused/restructured math exactly.
    fwd_f32 = jax.jit(functools.partial(deup_cat_forward, compute_dtype=jnp.float32))
    out_f32 = jax.block_until_ready(fwd_f32(x, prev, params))
    assert out_f32.shape == (N, Cout, 2 * D, 2 * H, 2 * W)
    assert jnp.allclose(out_f32, ref, rtol=1e-4, atol=1e-4), "f32 mismatch vs reference"

    # bf16 fast path (default): halves HBM traffic; looser tolerance.
    fwd_bf16 = jax.jit(functools.partial(deup_cat_forward, compute_dtype=jnp.bfloat16))
    out_bf16 = jax.block_until_ready(fwd_bf16(x, prev, params))
    assert out_bf16.shape == (N, Cout, 2 * D, 2 * H, 2 * W)
    assert jnp.allclose(out_bf16, ref, rtol=2e-2, atol=2e-2), "bf16 mismatch vs reference"

    print("KERNEL_OK")
</pallas_src>

<mosaic_0001>
module attributes {stable_mosaic.version = 11 : i64} {
  func.func @_deup_cat_kernel(%arg0: i32, %arg1: memref<16x1024xf32, #tpu.memory_space<vmem>>, %arg2: memref<64x1024xf32, #tpu.memory_space<vmem>>, %arg3: memref<64x16xf32, #tpu.memory_space<vmem>>, %arg4: memref<64x64xf32, #tpu.memory_space<vmem>>, %arg5: memref<64x1xf32, #tpu.memory_space<vmem>>, %arg6: memref<64x1024xf32, #tpu.memory_space<vmem>>) attributes {dimension_semantics = [#tpu.dimension_semantics<parallel>], iteration_bounds = array<i64: 1>, scalar_prefetch = 0 : i64, scratch_operands = 0 : i64, tpu.core_type = #tpu.core_type<tc>, window_params = [{transform_indices = @transform_0, window_bounds = array<i64: 16, 1024>}, {transform_indices = @transform_1, window_bounds = array<i64: 64, 1024>}, {pipeline_mode = #tpu.pipeline_mode<synchronous>, transform_indices = @transform_2, window_bounds = array<i64: 64, 16>}, {pipeline_mode = #tpu.pipeline_mode<synchronous>, transform_indices = @transform_3, window_bounds = array<i64: 64, 64>}, {pipeline_mode = #tpu.pipeline_mode<synchronous>, transform_indices = @transform_4, window_bounds = array<i64: 64, 1>}, {transform_indices = @transform_5, window_bounds = array<i64: 64, 1024>}]} {
    %c0 = arith.constant 0 : index
    %c0_0 = arith.constant 0 : index
    %0 = vector.load %arg4[%c0, %c0_0] : memref<64x64xf32, #tpu.memory_space<vmem>>, vector<64x64xf32>
    %c0_1 = arith.constant 0 : index
    %c0_2 = arith.constant 0 : index
    %1 = vector.load %arg2[%c0_1, %c0_2] : memref<64x1024xf32, #tpu.memory_space<vmem>>, vector<64x1024xf32>
    %cst = arith.constant dense<0.000000e+00> : vector<64x1024xf32>
    %2 = tpu.matmul %0, %1, %cst {dimension_numbers = #tpu.dot_dimension_numbers<[1], [0], [0], [1], [0, 0, 1, 1], [], []>} : vector<64x64xf32>, vector<64x1024xf32>, vector<64x1024xf32> -> vector<64x1024xf32>
    %c0_3 = arith.constant 0 : index
    %c0_4 = arith.constant 0 : index
    %3 = vector.load %arg3[%c0_3, %c0_4] : memref<64x16xf32, #tpu.memory_space<vmem>>, vector<64x16xf32>
    %c0_5 = arith.constant 0 : index
    %c0_6 = arith.constant 0 : index
    %4 = vector.load %arg1[%c0_5, %c0_6] : memref<16x1024xf32, #tpu.memory_space<vmem>>, vector<16x1024xf32>
    %cst_7 = arith.constant dense<0.000000e+00> : vector<64x1024xf32>
    %5 = tpu.matmul %3, %4, %cst_7 {dimension_numbers = #tpu.dot_dimension_numbers<[1], [0], [0], [1], [0, 0, 1, 1], [], []>} : vector<64x16xf32>, vector<16x1024xf32>, vector<64x1024xf32> -> vector<64x1024xf32>
    %6 = arith.addf %2, %5 : vector<64x1024xf32>
    %c0_8 = arith.constant 0 : index
    %c0_9 = arith.constant 0 : index
    %7 = vector.load %arg5[%c0_8, %c0_9] : memref<64x1xf32, #tpu.memory_space<vmem>>, vector<64x1xf32>
    %8 = vector.broadcast %7 : vector<64x1xf32> to vector<64x1024xf32>
    %9 = arith.addf %6, %8 : vector<64x1024xf32>
    %c0_10 = arith.constant 0 : index
    %c0_11 = arith.constant 0 : index
    %10 = vector.load %arg6[%c0_10, %c0_11] : memref<64x1024xf32, #tpu.memory_space<vmem>>, vector<64x1024xf32>
    tpu.vector_store %arg6[%c0_10, %c0_11], %9 {strides = array<i32>} : memref<64x1024xf32, #tpu.memory_space<vmem>>, vector<64x1024xf32>,
    return
  }
  func.func @transform_0(%arg0: i32) -> (i32, i32) {
    %c0_i32 = arith.constant 0 : i32
    %c0_i32_0 = arith.constant 0 : i32
    return %c0_i32, %arg0 : i32, i32
  }
  func.func @transform_1(%arg0: i32) -> (i32, i32) {
    %c0_i32 = arith.constant 0 : i32
    %c0_i32_0 = arith.constant 0 : i32
    return %c0_i32, %arg0 : i32, i32
  }
  func.func @transform_2(%arg0: i32) -> (i32, i32) {
    %c0_i32 = arith.constant 0 : i32
    %c0_i32_0 = arith.constant 0 : i32
    %c0_i32_1 = arith.constant 0 : i32
    return %c0_i32, %c0_i32_0 : i32, i32
  }
  func.func @transform_3(%arg0: i32) -> (i32, i32) {
    %c0_i32 = arith.constant 0 : i32
    %c0_i32_0 = arith.constant 0 : i32
    %c0_i32_1 = arith.constant 0 : i32
    return %c0_i32, %c0_i32_0 : i32, i32
  }
  func.func @transform_4(%arg0: i32) -> (i32, i32) {
    %c0_i32 = arith.constant 0 : i32
    %c0_i32_0 = arith.constant 0 : i32
    %c0_i32_1 = arith.constant 0 : i32
    return %c0_i32, %c0_i32_0 : i32, i32
  }
  func.func @transform_5(%arg0: i32) -> (i32, i32) {
    %c0_i32 = arith.constant 0 : i32
    %c0_i32_0 = arith.constant 0 : i32
    return %c0_i32, %arg0 : i32, i32
  }
}

</mosaic_0001>

<llo_original>
// kernel: deup_cat_forward.1
$region0: #{deup_cat_forward.1}
  #allocation0 [shape = 'u32[]', space=smem, size = 0x4, offset = 0x4, fixed_abs, tag = 'smem constant byte address 0x4 - core index']
  #allocation1 [shape = 'u32[144,128]{1,0:T(1,128)}', space=vmem, size = 0x12000, scoped, tag = 'internal scratch']
  %s0 = inlined_call_operand.vmem [shape: f32[16,1024], index: 0, kind: input, shape index: {}]
  %s1 = inlined_call_operand.vmem [shape: f32[64,1024], index: 1, kind: input, shape index: {}]
  %s2 = inlined_call_operand.vmem [shape: f32[64,16], index: 2, kind: input, shape index: {}]
  %s3 = inlined_call_operand.vmem [shape: f32[64,64], index: 3, kind: input, shape index: {}]
  %s4 = inlined_call_operand.vmem [shape: f32[64,1], index: 4, kind: input, shape index: {}]
  %s5 = inlined_call_operand.vmem [shape: f32[64,1024], index: 5, kind: output, shape index: {}]
  %s6 = sld [smem:[#allocation0]]
  $region30: #{deup_cat_forward.1} parent=0
    _
  %s8 = ssub.s32 1, %s6
  %s9 = scalar_select 0, %s8, %s6
  // Predicated region
  $region2: #{deup_cat_forward.1} parent=0 // pred_check
    _
  $region3: #{deup_cat_forward.1} parent=0 // pred_check_branch
    %11 = sbr.rel (0) target = $region5
  $region4: #{deup_cat_forward.1} parent=0 // pred_region
    _
  $region5: #{deup_cat_forward.1} parent=0 // pred_fallthru
    _
  // Predicated region
  $region6: #{deup_cat_forward.1} parent=0 // pred_check
    _
  $region7: #{deup_cat_forward.1} parent=0 // pred_check_branch
    %13 = sbr.rel (0) target = $region9
  $region8: #{deup_cat_forward.1} parent=0 // pred_region
    _
  $region9: #{deup_cat_forward.1} parent=0 // pred_fallthru
    _
  // Predicated region
  $region10: #{deup_cat_forward.1} parent=0 // pred_check
    _
  $region11: #{deup_cat_forward.1} parent=0 // pred_check_branch
    %15 = sbr.rel (0) target = $region13
  $region12: #{deup_cat_forward.1} parent=0 // pred_region
    _
  $region13: #{deup_cat_forward.1} parent=0 // pred_fallthru
    _
  // Predicated region
  $region14: #{deup_cat_forward.1} parent=0 // pred_check
    _
  $region15: #{deup_cat_forward.1} parent=0 // pred_check_branch
    %17 = sbr.rel (0) target = $region17
  $region16: #{deup_cat_forward.1} parent=0 // pred_region
    _
  $region17: #{deup_cat_forward.1} parent=0 // pred_fallthru
    _
  // Predicated region
  $region18: #{deup_cat_forward.1} parent=0 // pred_check
    _
  $region19: #{deup_cat_forward.1} parent=0 // pred_check_branch
    %19 = sbr.rel (0) target = $region21
  $region20: #{deup_cat_forward.1} parent=0 // pred_region
    _
  $region21: #{deup_cat_forward.1} parent=0 // pred_fallthru
    _
  %v20 = vld [vmem:[%s3] sm:$0xff]
  %v21 = vld [vmem:[%s3 + $0x8] sm:$0xff]
  %v22 = vld [vmem:[%s3 + $0x10] sm:$0xff]
  %v23 = vld [vmem:[%s3 + $0x18] sm:$0xff]
  %v24 = vld [vmem:[%s3 + $0x20] sm:$0xff]
  %v25 = vld [vmem:[%s3 + $0x28] sm:$0xff]
  %v26 = vld [vmem:[%s3 + $0x30] sm:$0xff]
  %v27 = vld [vmem:[%s3 + $0x38] sm:$0xff]
  %v28 = vld [vmem:[%s1] sm:$0xff]
  %v29 = vld [vmem:[%s1 + $0x8] sm:$0xff]
  %v30 = vld [vmem:[%s1 + $0x10] sm:$0xff]
  %v31 = vld [vmem:[%s1 + $0x18] sm:$0xff]
  %v32 = vld [vmem:[%s1 + $0x20] sm:$0xff]
  %v33 = vld [vmem:[%s1 + $0x28] sm:$0xff]
  %v34 = vld [vmem:[%s1 + $0x30] sm:$0xff]
  %v35 = vld [vmem:[%s1 + $0x38] sm:$0xff]
  %v36 = vld [vmem:[%s1 + $0x40] sm:$0xff]
  %v37 = vld [vmem:[%s1 + $0x48] sm:$0xff]
  %v38 = vld [vmem:[%s1 + $0x50] sm:$0xff]
  %v39 = vld [vmem:[%s1 + $0x58] sm:$0xff]
  %v40 = vld [vmem:[%s1 + $0x60] sm:$0xff]
  %v41 = vld [vmem:[%s1 + $0x68] sm:$0xff]
  %v42 = vld [vmem:[%s1 + $0x70] sm:$0xff]
  %v43 = vld [vmem:[%s1 + $0x78] sm:$0xff]
  %v44 = vld [vmem:[%s1 + $0x80] sm:$0xff]
  %v45 = vld [vmem:[%s1 + $0x88] sm:$0xff]
  %v46 = vld [vmem:[%s1 + $0x90] sm:$0xff]
  %v47 = vld [vmem:[%s1 + $0x98] sm:$0xff]
  %v48 = vld [vmem:[%s1 + $0xa0] sm:$0xff]
  %v49 = vld [vmem:[%s1 + $0xa8] sm:$0xff]
  %v50 = vld [vmem:[%s1 + $0xb0] sm:$0xff]
  %v51 = vld [vmem:[%s1 + $0xb8] sm:$0xff]
  %v52 = vld [vmem:[%s1 + $0xc0] sm:$0xff]
  %v53 = vld [vmem:[%s1 + $0xc8] sm:$0xff]
  %v54 = vld [vmem:[%s1 + $0xd0] sm:$0xff]
  %v55 = vld [vmem:[%s1 + $0xd8] sm:$0xff]
  %v56 = vld [vmem:[%s1 + $0xe0] sm:$0xff]
  %v57 = vld [vmem:[%s1 + $0xe8] sm:$0xff]
  %v58 = vld [vmem:[%s1 + $0xf0] sm:$0xff]
  %v59 = vld [vmem:[%s1 + $0xf8] sm:$0xff]
  %v60 = vld [vmem:[%s1 + $0x100] sm:$0xff]
  %v61 = vld [vmem:[%s1 + $0x108] sm:$0xff]
  %v62 = vld [vmem:[%s1 + $0x110] sm:$0xff]
  %v63 = vld [vmem:[%s1 + $0x118] sm:$0xff]
  %v64 = vld [vmem:[%s1 + $0x120] sm:$0xff]
  %v65 = vld [vmem:[%s1 + $0x128] sm:$0xff]
  %v66 = vld [vmem:[%s1 + $0x130] sm:$0xff]
  %v67 = vld [vmem:[%s1 + $0x138] sm:$0xff]
  %v68 = vld [vmem:[%s1 + $0x140] sm:$0xff]
  %v69 = vld [vmem:[%s1 + $0x148] sm:$0xff]
  %v70 = vld [vmem:[%s1 + $0x150] sm:$0xff]
  %v71 = vld [vmem:[%s1 + $0x158] sm:$0xff]
  %v72 = vld [vmem:[%s1 + $0x160] sm:$0xff]
  %v73 = vld [vmem:[%s1 + $0x168] sm:$0xff]
  %v74 = vld [vmem:[%s1 + $0x170] sm:$0xff]
  %v75 = vld [vmem:[%s1 + $0x178] sm:$0xff]
  %v76 = vld [vmem:[%s1 + $0x180] sm:$0xff]
  %v77 = vld [vmem:[%s1 + $0x188] sm:$0xff]
  %v78 = vld [vmem:[%s1 + $0x190] sm:$0xff]
  %v79 = vld [vmem:[%s1 + $0x198] sm:$0xff]
  %v80 = vld [vmem:[%s1 + $0x1a0] sm:$0xff]
  %v81 = vld [vmem:[%s1 + $0x1a8] sm:$0xff]
  %v82 = vld [vmem:[%s1 + $0x1b0] sm:$0xff]
  %v83 = vld [vmem:[%s1 + $0x1b8] sm:$0xff]
  %v84 = vld [vmem:[%s1 + $0x1c0] sm:$0xff]
  %v85 = vld [vmem:[%s1 + $0x1c8] sm:$0xff]
  %v86 = vld [vmem:[%s1 + $0x1d0] sm:$0xff]
  %v87 = vld [vmem:[%s1 + $0x1d8] sm:$0xff]
  %v88 = vld [vmem:[%s1 + $0x1e0] sm:$0xff]
  %v89 = vld [vmem:[%s1 + $0x1e8] sm:$0xff]
  %v90 = vld [vmem:[%s1 + $0x1f0] sm:$0xff]
  %v91 = vld [vmem:[%s1 + $0x1f8] sm:$0xff]
  %v92 = vld [vmem:[%s2] sm:$0xff]
  %v93 = vld [vmem:[%s2 + $0x8] sm:$0xff]
  %v94 = vld [vmem:[%s2 + $0x10] sm:$0xff]
  %v95 = vld [vmem:[%s2 + $0x18] sm:$0xff]
  %v96 = vld [vmem:[%s2 + $0x20] sm:$0xff]
  %v97 = vld [vmem:[%s2 + $0x28] sm:$0xff]
  %v98 = vld [vmem:[%s2 + $0x30] sm:$0xff]
  %v99 = vld [vmem:[%s2 + $0x38] sm:$0xff]
  %v100 = vld [vmem:[%s0] sm:$0xff]
  %v101 = vld [vmem:[%s0 + $0x8] sm:$0xff]
  %v102 = vld [vmem:[%s0 + $0x10] sm:$0xff]
  %v103 = vld [vmem:[%s0 + $0x18] sm:$0xff]
  %v104 = vld [vmem:[%s0 + $0x20] sm:$0xff]
  %v105 = vld [vmem:[%s0 + $0x28] sm:$0xff]
  %v106 = vld [vmem:[%s0 + $0x30] sm:$0xff]
  %v107 = vld [vmem:[%s0 + $0x38] sm:$0xff]
  %v108 = vld [vmem:[%s0 + $0x40] sm:$0xff]
  %v109 = vld [vmem:[%s0 + $0x48] sm:$0xff]
  %v110 = vld [vmem:[%s0 + $0x50] sm:$0xff]
  %v111 = vld [vmem:[%s0 + $0x58] sm:$0xff]
  %v112 = vld [vmem:[%s0 + $0x60] sm:$0xff]
  %v113 = vld [vmem:[%s0 + $0x68] sm:$0xff]
  %v114 = vld [vmem:[%s0 + $0x70] sm:$0xff]
  %v115 = vld [vmem:[%s0 + $0x78] sm:$0xff]
  %vm116 = vcmask 130048
  %v118 = vsel %vm116, %v92, 0
  %v121 = vsel %vm116, %v93, 0
  %v124 = vsel %vm116, %v94, 0
  %v127 = vsel %vm116, %v95, 0
  %v130 = vsel %vm116, %v96, 0
  %v133 = vsel %vm116, %v97, 0
  %v136 = vsel %vm116, %v98, 0
  %v139 = vsel %vm116, %v99, 0
  %141 = vmatprep.subr.mxu0 %v101
  %142 = vmatpush1.msra.mxu0 %v100
  %143 = vmatprep.subr.mxu0 %v109
  %144 = vmatpush1.msra.mxu0 %v108
  %145 = vmatprep.subr.mxu0 0.0
  %146 = vmatpush1.msra.mxu0 0.0
  %147 = vmatprep.subr.mxu0 0.0
  %148 = vmatpush1.msra.mxu0 0.0
  %149 = vmatprep.subr.mxu0 0.0
  %150 = vmatpush1.msra.mxu0 0.0
  %151 = vmatprep.subr.mxu0 0.0
  %152 = vmatpush1.msra.mxu0 0.0
  %153 = vmatprep.subr.mxu0 0.0
  %154 = vmatpush1.msra.mxu0 0.0
  %155 = vmatprep.subr.mxu0 0.0
  %156 = vmatpush1.msra.mxu0 0.0
  %157 = vmatprep.subr.mxu0 0.0
  %158 = vmatpush1.msra.mxu0 0.0
  %159 = vmatprep.subr.mxu0 0.0
  %160 = vmatpush1.msra.mxu0 0.0
  %161 = vmatprep.subr.mxu0 0.0
  %162 = vmatpush1.msra.mxu0 0.0
  %163 = vmatprep.subr.mxu0 0.0
  %164 = vmatpush1.msra.mxu0 0.0
  %165 = vmatprep.subr.mxu0 0.0
  %166 = vmatpush1.msra.mxu0 0.0
  %167 = vmatprep.subr.mxu0 0.0
  %168 = vmatpush1.msra.mxu0 0.0
  %169 = vmatprep.subr.mxu0 0.0
  %170 = vmatpush1.msra.mxu0 0.0
  %171 = vmatprep.subr.mxu0 0.0
  %172 = vmatpush1.msra.mxu0 0.0
  %173 = vmatprep.subr.mxu0 0.0
  %174 = vmatpush1.msra.mxu0 0.0
  %175 = vmatprep.subr.mxu0 0.0
  %176 = vmatpush1.msra.mxu0 0.0
  %177 = vmatprep.subr.mxu0 0.0
  %178 = vmatpush1.msra.mxu0 0.0
  %179 = vmatprep.subr.mxu0 0.0
  %180 = vmatpush1.msra.mxu0 0.0
  %181 = vmatprep.subr.mxu0 0.0
  %182 = vmatpush1.msra.mxu0 0.0
  %183 = vmatprep.subr.mxu0 0.0
  %184 = vmatpush1.msra.mxu0 0.0
  %185 = vmatprep.subr.mxu0 0.0
  %186 = vmatpush1.msra.mxu0 0.0
  %187 = vmatprep.subr.mxu0 0.0
  %188 = vmatpush1.msra.mxu0 0.0
  %189 = vmatprep.subr.mxu0 0.0
  %190 = vmatpush1.msra.mxu0 0.0
  %191 = vmatprep.subr.mxu0 0.0
  %192 = vmatpush1.msra.mxu0 0.0
  %193 = vmatprep.subr.mxu0 0.0
  %194 = vmatpush1.msra.mxu0 0.0
  %195 = vmatprep.subr.mxu0 0.0
  %196 = vmatpush1.msra.mxu0 0.0
  %197 = vmatprep.subr.mxu0 0.0
  %198 = vmatpush1.msra.mxu0 0.0
  %199 = vmatprep.subr.mxu0 0.0
  %200 = vmatpush1.msra.mxu0 0.0
  %201 = vmatprep.subr.mxu0 0.0
  %202 = vmatpush1.msra.mxu0 0.0
  %203 = vmatprep.subr.mxu0 0.0
  %204 = vmatpush1.msra.mxu0 0.0
  %205 = vmatprep.mubr.f32.mxu0 0.0
  %206 = vmatmul.mubr.f32.gmra.mrb[0].mxu0 %v118
  %v207 = vpop.f32.mrb[0].mxu0
  %v208 = vadd.f32 0.0, %v207
  %v209 = vpop.f32.mrb[0].mxu0
  %v210 = vadd.f32 0.0, %v209
  %211 = vmatprep.mubr.f32.mxu0 0.0
  %212 = vmatmul.mubr.f32.gmra.mrb[0].mxu0 %v121
  %v213 = vpop.f32.mrb[0].mxu0
  %v214 = vadd.f32 0.0, %v213
  %v215 = vpop.f32.mrb[0].mxu0
  %v216 = vadd.f32 0.0, %v215
  %217 = vmatprep.mubr.f32.mxu0 0.0
  %218 = vmatmul.mubr.f32.gmra.mrb[0].mxu0 %v124
  %v219 = vpop.f32.mrb[0].mxu0
  %v220 = vadd.f32 0.0, %v219
  %v221 = vpop.f32.mrb[0].mxu0
  %v222 = vadd.f32 0.0, %v221
  %223 = vmatprep.mubr.f32.mxu0 0.0
  %224 = vmatmul.mubr.f32.gmra.mrb[0].mxu0 %v127
  %v225 = vpop.f32.mrb[0].mxu0
  %v226 = vadd.f32 0.0, %v225
  %v227 = vpop.f32.mrb[0].mxu0
  %v228 = vadd.f32 0.0, %v227
  %229 = vmatprep.mubr.f32.mxu0 0.0
  %230 = vmatmul.mubr.f32.gmra.mrb[0].mxu0 %v130
  %v231 = vpop.f32.mrb[0].mxu0
  %v232 = vadd.f32 0.0, %v231
  %v233 = vpop.f32.mrb[0].mxu0
  %v234 = vadd.f32 0.0, %v233
  %235 = vmatprep.mubr.f32.mxu0 0.0
  %236 = vmatmul.mubr.f32.gmra.mrb[0].mxu0 %v133
  %v237 = vpop.f32.mrb[0].mxu0
  %v238 = vadd.f32 0.0, %v237
  %v239 = vpop.f32.mrb[0].mxu0
  %v240 = vadd.f32 0.0, %v239
  %241 = vmatprep.mubr.f32.mxu0 0.0
  %242 = vmatmul.mubr.f32.gmra.mrb[0].mxu0 %v136
  %v243 = vpop.f32.mrb[0].mxu0
  %v244 = vadd.f32 0.0, %v243
  %v245 = vpop.f32.mrb[0].mxu0
  %v246 = vadd.f32 0.0, %v245
  %247 = vmatprep.mubr.f32.mxu0 0.0
  %248 = vmatmul.mubr.f32.gmra.mrb[0].mxu0 %v139
  %v249 = vpop.f32.mrb[0].mxu0
  %v250 = vadd.f32 0.0, %v249
  %v251 = vpop.f32.mrb[0].mxu0
  %v252 = vadd.f32 0.0, %v251
  %253 = vdwg.mxu0
  %254 = vmatprep.subr.mxu0 %v103
  %255 = vmatpush1.msra.mxu0 %v102
  %256 = vmatprep.subr.mxu0 %v111
  %257 = vmatpush1.msra.mxu0 %v110
  %258 = vmatprep.subr.mxu0 0.0
  %259 = vmatpush1.msra.mxu0 0.0
  %260 = vmatprep.subr.mxu0 0.0
  %261 = vmatpush1.msra.mxu0 0.0
  %262 = vmatprep.subr.mxu0 0.0
  %263 = vmatpush1.msra.mxu0 0.0
  %264 = vmatprep.subr.mxu0 0.0
  %265 = vmatpush1.msra.mxu0 0.0
  %266 = vmatprep.subr.mxu0 0.0
  %267 = vmatpush1.msra.mxu0 0.0
  %268 = vmatprep.subr.mxu0 0.0
  %269 = vmatpush1.msra.mxu0 0.0
  %270 = vmatprep.subr.mxu0 0.0
  %271 = vmatpush1.msra.mxu0 0.0
  %272 = vmatprep.subr.mxu0 0.0
  %273 = vmatpush1.msra.mxu0 0.0
  %274 = vmatprep.subr.mxu0 0.0
  %275 = vmatpush1.msra.mxu0 0.0
  %276 = vmatprep.subr.mxu0 0.0
  %277 = vmatpush1.msra.mxu0 0.0
  %278 = vmatprep.subr.mxu0 0.0
  %279 = vmatpush1.msra.mxu0 0.0
  %280 = vmatprep.subr.mxu0 0.0
  %281 = vmatpush1.msra.mxu0 0.0
  %282 = vmatprep.subr.mxu0 0.0
  %283 = vmatpush1.msra.mxu0 0.0
  %284 = vmatprep.subr.mxu0 0.0
  %285 = vmatpush1.msra.mxu0 0.0
  %286 = vmatprep.subr.mxu0 0.0
  %287 = vmatpush1.msra.mxu0 0.0
  %288 = vmatprep.subr.mxu0 0.0
  %289 = vmatpush1.msra.mxu0 0.0
  %290 = vmatprep.subr.mxu0 0.0
  %291 = vmatpush1.msra.mxu0 0.0
  %292 = vmatprep.subr.mxu0 0.0
  %293 = vmatpush1.msra.mxu0 0.0
  %294 = vmatprep.subr.mxu0 0.0
  %295 = vmatpush1.msra.mxu0 0.0
  %296 = vmatprep.subr.mxu0 0.0
  %297 = vmatpush1.msra.mxu0 0.0
  %298 = vmatprep.subr.mxu0 0.0
  %299 = vmatpush1.msra.mxu0 0.0
  %300 = vmatprep.subr.mxu0 0.0
  %301 = vmatpush1.msra.mxu0 0.0
  %302 = vmatprep.subr.mxu0 0.0
  %303 = vmatpush1.msra.mxu0 0.0
  %304 = vmatprep.subr.mxu0 0.0
  %305 = vmatpush1.msra.mxu0 0.0
  %306 = vmatprep.subr.mxu0 0.0
  %307 = vmatpush1.msra.mxu0 0.0
  %308 = vmatprep.subr.mxu0 0.0
  %309 = vmatpush1.msra.mxu0 0.0
  %310 = vmatprep.subr.mxu0 0.0
  %311 = vmatpush1.msra.mxu0 0.0
  %312 = vmatprep.subr.mxu0 0.0
  %313 = vmatpush1.msra.mxu0 0.0
  %314 = vmatprep.subr.mxu0 0.0
  %315 = vmatpush1.msra.mxu0 0.0
  %316 = vmatprep.subr.mxu0 0.0
  %317 = vmatpush1.msra.mxu0 0.0
  %318 = vmatprep.mubr.f32.mxu0 0.0
  %319 = vmatmul.mubr.f32.gmra.mrb[0].mxu0 %v118
  %v320 = vpop.f32.mrb[0].mxu0
  %v321 = vadd.f32 0.0, %v320
  %v322 = vpop.f32.mrb[0].mxu0
  %v323 = vadd.f32 0.0, %v322
  %324 = vmatprep.mubr.f32.mxu0 0.0
  %325 = vmatmul.mubr.f32.gmra.mrb[0].mxu0 %v121
  %v326 = vpop.f32.mrb[0].mxu0
  %v327 = vadd.f32 0.0, %v326
  %v328 = vpop.f32.mrb[0].mxu0
  %v329 = vadd.f32 0.0, %v328
  %330 = vmatprep.mubr.f32.mxu0 0.0
  %331 = vmatmul.mubr.f32.gmra.mrb[0].mxu0 %v124
  %v332 = vpop.f32.mrb[0].mxu0
  %v333 = vadd.f32 0.0, %v332
  %v334 = vpop.f32.mrb[0].mxu0
  %v335 = vadd.f32 0.0, %v334
  %336 = vmatprep.mubr.f32.mxu0 0.0
  %337 = vmatmul.mubr.f32.gmra.mrb[0].mxu0 %v127
  %v338 = vpop.f32.mrb[0].mxu0
  %v339 = vadd.f32 0.0, %v338
  %v340 = vpop.f32.mrb[0].mxu0
  %v341 = vadd.f32 0.0, %v340
  %342 = vmatprep.mubr.f32.mxu0 0.0
  %343 = vmatmul.mubr.f32.gmra.mrb[0].mxu0 %v130
  %v344 = vpop.f32.mrb[0].mxu0
  %v345 = vadd.f32 0.0, %v344
  %v346 = vpop.f32.mrb[0].mxu0
  %v347 = vadd.f32 0.0, %v346
  %348 = vmatprep.mubr.f32.mxu0 0.0
  %349 = vmatmul.mubr.f32.gmra.mrb[0].mxu0 %v133
  %v350 = vpop.f32.mrb[0].mxu0
  %v351 = vadd.f32 0.0, %v350
  %v352 = vpop.f32.mrb[0].mxu0
  %v353 = vadd.f32 0.0, %v352
  %354 = vmatprep.mubr.f32.mxu0 0.0
  %355 = vmatmul.mubr.f32.gmra.mrb[0].mxu0 %v136
  %v356 = vpop.f32.mrb[0].mxu0
  %v357 = vadd.f32 0.0, %v356
  %v358 = vpop.f32.mrb[0].mxu0
  %v359 = vadd.f32 0.0, %v358
  %360 = vmatprep.mubr.f32.mxu0 0.0
  %361 = vmatmul.mubr.f32.gmra.mrb[0].mxu0 %v139
  %v362 = vpop.f32.mrb[0].mxu0
  %v363 = vadd.f32 0.0, %v362
  %v364 = vpop.f32.mrb[0].mxu0
  %v365 = vadd.f32 0.0, %v364
  %366 = vdwg.mxu0
  %367 = vmatprep.subr.mxu0 %v105
  %368 = vmatpush1.msra.mxu0 %v104
  %369 = vmatprep.subr.mxu0 %v113
  %370 = vmatpush1.msra.mxu0 %v112
  %371 = vmatprep.subr.mxu0 0.0
  %372 = vmatpush1.msra.mxu0 0.0
  %373 = vmatprep.subr.mxu0 0.0
  %374 = vmatpush1.msra.mxu0 0.0
  %375 = vmatprep.subr.mxu0 0.0
  %376 = vmatpush1.msra.mxu0 0.0
  %377 = vmatprep.subr.mxu0 0.0
  %378 = vmatpush1.msra.mxu0 0.0
  %379 = vmatprep.subr.mxu0 0.0
  %380 = vmatpush1.msra.mxu0 0.0
  %381 = vmatprep.subr.mxu0 0.0
  %382 = vmatpush1.msra.mxu0 0.0
  %383 = vmatprep.subr.mxu0 0.0
  %384 = vmatpush1.msra.mxu0 0.0
  %385 = vmatprep.subr.mxu0 0.0
  %386 = vmatpush1.msra.mxu0 0.0
  %387 = vmatprep.subr.mxu0 0.0
  %388 = vmatpush1.msra.mxu0 0.0
  %389 = vmatprep.subr.mxu0 0.0
  %390 = vmatpush1.msra.mxu0 0.0
  %391 = vmatprep.subr.mxu0 0.0
  %392 = vmatpush1.msra.mxu0 0.0
  %393 = vmatprep.subr.mxu0 0.0
  %394 = vmatpush1.msra.mxu0 0.0
  %395 = vmatprep.subr.mxu0 0.0
  %396 = vmatpush1.msra.mxu0 0.0
  %397 = vmatprep.subr.mxu0 0.0
  %398 = vmatpush1.msra.mxu0 0.0
  %399 = vmatprep.subr.mxu0 0.0
  %400 = vmatpush1.msra.mxu0 0.0
  %401 = vmatprep.subr.mxu0 0.0
  %402 = vmatpush1.msra.mxu0 0.0
  %403 = vmatprep.subr.mxu0 0.0
  %404 = vmatpush1.msra.mxu0 0.0
  %405 = vmatprep.subr.mxu0 0.0
  %406 = vmatpush1.msra.mxu0 0.0
  %407 = vmatprep.subr.mxu0 0.0
  %408 = vmatpush1.msra.mxu0 0.0
  %409 = vmatprep.subr.mxu0 0.0
  %410 = vmatpush1.msra.mxu0 0.0
  %411 = vmatprep.subr.mxu0 0.0
  %412 = vmatpush1.msra.mxu0 0.0
  %413 = vmatprep.subr.mxu0 0.0
  %414 = vmatpush1.msra.mxu0 0.0
  %415 = vmatprep.subr.mxu0 0.0
  %416 = vmatpush1.msra.mxu0 0.0
  %417 = vmatprep.subr.mxu0 0.0
  %418 = vmatpush1.msra.mxu0 0.0
  %419 = vmatprep.subr.mxu0 0.0
  %420 = vmatpush1.msra.mxu0 0.0
  %421 = vmatprep.subr.mxu0 0.0
  %422 = vmatpush1.msra.mxu0 0.0
  %423 = vmatprep.subr.mxu0 0.0
  %424 = vmatpush1.msra.mxu0 0.0
  %425 = vmatprep.subr.mxu0 0.0
  %426 = vmatpush1.msra.mxu0 0.0
  %427 = vmatprep.subr.mxu0 0.0
  %428 = vmatpush1.msra.mxu0 0.0
  %429 = vmatprep.subr.mxu0 0.0
  %430 = vmatpush1.msra.mxu0 0.0
  %431 = vmatprep.mubr.f32.mxu0 0.0
  %432 = vmatmul.mubr.f32.gmra.mrb[0].mxu0 %v118
  %v433 = vpop.f32.mrb[0].mxu0
  %v434 = vadd.f32 0.0, %v433
  %v435 = vpop.f32.mrb[0].mxu0
  %v436 = vadd.f32 0.0, %v435
  %437 = vmatprep.mubr.f32.mxu0 0.0
  %438 = vmatmul.mubr.f32.gmra.mrb[0].mxu0 %v121
  %v439 = vpop.f32.mrb[0].mxu0
  %v440 = vadd.f32 0.0, %v439
  %v441 = vpop.f32.mrb[0].mxu0
  %v442 = vadd.f32 0.0, %v441
  %443 = vmatprep.mubr.f32.mxu0 0.0
  %444 = vmatmul.mubr.f32.gmra.mrb[0].mxu0 %v124
  %v445 = vpop.f32.mrb[0].mxu0
  %v446 = vadd.f32 0.0, %v445
  %v447 = vpop.f32.mrb[0].mxu0
  %v448 = vadd.f32 0.0, %v447
  %449 = vmatprep.mubr.f32.mxu0 0.0
  %450 = vmatmul.mubr.f32.gmra.mrb[0].mxu0 %v127
  %v451 = vpop.f32.mrb[0].mxu0
  %v452 = vadd.f32 0.0, %v451
  %v453 = vpop.f32.mrb[0].mxu0
  %v454 = vadd.f32 0.0, %v453
  %455 = vmatprep.mubr.f32.mxu0 0.0
  %456 = vmatmul.mubr.f32.gmra.mrb[0].mxu0 %v130
  %v457 = vpop.f32.mrb[0].mxu0
  %v458 = vadd.f32 0.0, %v457
  %v459 = vpop.f32.mrb[0].mxu0
  %v460 = vadd.f32 0.0, %v459
  %461 = vmatprep.mubr.f32.mxu0 0.0
  %462 = vmatmul.mubr.f32.gmra.mrb[0].mxu0 %v133
  %v463 = vpop.f32.mrb[0].mxu0
  %v464 = vadd.f32 0.0, %v463
  %v465 = vpop.f32.mrb[0].mxu0
  %v466 = vadd.f32 0.0, %v465
  %467 = vmatprep.mubr.f32.mxu0 0.0
  %468 = vmatmul.mubr.f32.gmra.mrb[0].mxu0 %v136
  %v469 = vpop.f32.mrb[0].mxu0
  %v470 = vadd.f32 0.0, %v469
  %v471 = vpop.f32.mrb[0].mxu0
  %v472 = vadd.f32 0.0, %v471
  %473 = vmatprep.mubr.f32.mxu0 0.0
  %474 = vmatmul.mubr.f32.gmra.mrb[0].mxu0 %v139
  %v475 = vpop.f32.mrb[0].mxu0
  %v476 = vadd.f32 0.0, %v475
  %v477 = vpop.f32.mrb[0].mxu0
  %v478 = vadd.f32 0.0, %v477
  %479 = vdwg.mxu0
  %480 = vmatprep.subr.mxu0 %v107
  %481 = vmatpush1.msra.mxu0 %v106
  %482 = vmatprep.subr.mxu0 %v115
  %483 = vmatpush1.msra.mxu0 %v114
  %484 = vmatprep.subr.mxu0 0.0
  %485 = vmatpush1.msra.mxu0 0.0
  %486 = vmatprep.subr.mxu0 0.0
  %487 = vmatpush1.msra.mxu0 0.0
  %488 = vmatprep.subr.mxu0 0.0
  %489 = vmatpush1.msra.mxu0 0.0
  %490 = vmatprep.subr.mxu0 0.0
  %491 = vmatpush1.msra.mxu0 0.0
  %492 = vmatprep.subr.mxu0 0.0
  %493 = vmatpush1.msra.mxu0 0.0
  %494 = vmatprep.subr.mxu0 0.0
  %495 = vmatpush1.msra.mxu0 0.0
  %496 = vmatprep.subr.mxu0 0.0
  %497 = vmatpush1.msra.mxu0 0.0
  %498 = vmatprep.subr.mxu0 0.0
  %499 = vmatpush1.msra.mxu0 0.0
  %500 = vmatprep.subr.mxu0 0.0
  %501 = vmatpush1.msra.mxu0 0.0
  %502 = vmatprep.subr.mxu0 0.0
  %503 = vmatpush1.msra.mxu0 0.0
  %504 = vmatprep.subr.mxu0 0.0
  %505 = vmatpush1.msra.mxu0 0.0
  %506 = vmatprep.subr.mxu0 0.0
  %507 = vmatpush1.msra.mxu0 0.0
  %508 = vmatprep.subr.mxu0 0.0
  %509 = vmatpush1.msra.mxu0 0.0
  %510 = vmatprep.subr.mxu0 0.0
  %511 = vmatpush1.msra.mxu0 0.0
  %512 = vmatprep.subr.mxu0 0.0
  %513 = vmatpush1.msra.mxu0 0.0
  %514 = vmatprep.subr.mxu0 0.0
  %515 = vmatpush1.msra.mxu0 0.0
  %516 = vmatprep.subr.mxu0 0.0
  %517 = vmatpush1.msra.mxu0 0.0
  %518 = vmatprep.subr.mxu0 0.0
  %519 = vmatpush1.msra.mxu0 0.0
  %520 = vmatprep.subr.mxu0 0.0
  %521 = vmatpush1.msra.mxu0 0.0
  %522 = vmatprep.subr.mxu0 0.0
  %523 = vmatpush1.msra.mxu0 0.0
  %524 = vmatprep.subr.mxu0 0.0
  %525 = vmatpush1.msra.mxu0 0.0
  %526 = vmatprep.subr.mxu0 0.0
  %527 = vmatpush1.msra.mxu0 0.0
  %528 = vmatprep.subr.mxu0 0.0
  %529 = vmatpush1.msra.mxu0 0.0
  %530 = vmatprep.subr.mxu0 0.0
  %531 = vmatpush1.msra.mxu0 0.0
  %532 = vmatprep.subr.mxu0 0.0
  %533 = vmatpush1.msra.mxu0 0.0
  %534 = vmatprep.subr.mxu0 0.0
  %535 = vmatpush1.msra.mxu0 0.0
  %536 = vmatprep.subr.mxu0 0.0
  %537 = vmatpush1.msra.mxu0 0.0
  %538 = vmatprep.subr.mxu0 0.0
  %539 = vmatpush1.msra.mxu0 0.0
  %540 = vmatprep.subr.mxu0 0.0
  %541 = vmatpush1.msra.mxu0 0.0
  %542 = vmatprep.subr.mxu0 0.0
  %543 = vmatpush1.msra.mxu0 0.0
  %544 = vmatprep.mubr.f32.mxu0 0.0
  %545 = vmatmul.mubr.f32.gmra.mrb[0].mxu0 %v118
  %v546 = vpop.f32.mrb[0].mxu0
  %v547 = vadd.f32 0.0, %v546
  %v548 = vpop.f32.mrb[0].mxu0
  %v549 = vadd.f32 0.0, %v548
  %550 = vmatprep.mubr.f32.mxu0 0.0
  %551 = vmatmul.mubr.f32.gmra.mrb[0].mxu0 %v121
  %v552 = vpop.f32.mrb[0].mxu0
  %v553 = vadd.f32 0.0, %v552
  %v554 = vpop.f32.mrb[0].mxu0
  %v555 = vadd.f32 0.0, %v554
  %556 = vmatprep.mubr.f32.mxu0 0.0
  %557 = vmatmul.mubr.f32.gmra.mrb[0].mxu0 %v124
  %v558 = vpop.f32.mrb[0].mxu0
  %v559 = vadd.f32 0.0, %v558
  %v560 = vpop.f32.mrb[0].mxu0
  %v561 = vadd.f32 0.0, %v560
  %562 = vmatprep.mubr.f32.mxu0 0.0
  %563 = vmatmul.mubr.f32.gmra.mrb[0].mxu0 %v127
  %v564 = vpop.f32.mrb[0].mxu0
  %v565 = vadd.f32 0.0, %v564
  %v566 = vpop.f32.mrb[0].mxu0
  %v567 = vadd.f32 0.0, %v566
  %568 = vmatprep.mubr.f32.mxu0 0.0
  %569 = vmatmul.mubr.f32.gmra.mrb[0].mxu0 %v130
  %v570 = vpop.f32.mrb[0].mxu0
  %v571 = vadd.f32 0.0, %v570
  %v572 = vpop.f32.mrb[0].mxu0
  %v573 = vadd.f32 0.0, %v572
  %574 = vmatprep.mubr.f32.mxu0 0.0
  %575 = vmatmul.mubr.f32.gmra.mrb[0].mxu0 %v133
  %v576 = vpop.f32.mrb[0].mxu0
  %v577 = vadd.f32 0.0, %v576
  %v578 = vpop.f32.mrb[0].mxu0
  %v579 = vadd.f32 0.0, %v578
  %580 = vmatprep.mubr.f32.mxu0 0.0
  %581 = vmatmul.mubr.f32.gmra.mrb[0].mxu0 %v136
  %v582 = vpop.f32.mrb[0].mxu0
  %v583 = vadd.f32 0.0, %v582
  %v584 = vpop.f32.mrb[0].mxu0
  %v585 = vadd.f32 0.0, %v584
  %586 = vmatprep.mubr.f32.mxu0 0.0
  %587 = vmatmul.mubr.f32.gmra.mrb[0].mxu0 %v139
  %v588 = vpop.f32.mrb[0].mxu0
  %v589 = vadd.f32 0.0, %v588
  %v590 = vpop.f32.mrb[0].mxu0
  %v591 = vadd.f32 0.0, %v590
  %592 = vdwg.mxu0
  %vm593 = vcmask 523264
  %v595 = vsel %vm593, %v20, 0
  %v598 = vsel %vm593, %v21, 0
  %v601 = vsel %vm593, %v22, 0
  %v604 = vsel %vm593, %v23, 0
  %v607 = vsel %vm593, %v24, 0
  %v610 = vsel %vm593, %v25, 0
  %v613 = vsel %vm593, %v26, 0
  %v616 = vsel %vm593, %v27, 0
  %618 = vmatprep.subr.mxu0 %v29
  %619 = vmatpush1.msra.mxu0 %v28
  %620 = vmatprep.subr.mxu0 %v37
  %621 = vmatpush1.msra.mxu0 %v36
  %622 = vmatprep.subr.mxu0 %v45
  %623 = vmatpush1.msra.mxu0 %v44
  %624 = vmatprep.subr.mxu0 %v53
  %625 = vmatpush1.msra.mxu0 %v52
  %626 = vmatprep.subr.mxu0 %v61
  %627 = vmatpush1.msra.mxu0 %v60
  %628 = vmatprep.subr.mxu0 %v69
  %629 = vmatpush1.msra.mxu0 %v68
  %630 = vmatprep.subr.mxu0 %v77
  %631 = vmatpush1.msra.mxu0 %v76
  %632 = vmatprep.subr.mxu0 %v85
  %633 = vmatpush1.msra.mxu0 %v84
  %634 = vmatprep.subr.mxu0 0.0
  %635 = vmatpush1.msra.mxu0 0.0
  %636 = vmatprep.subr.mxu0 0.0
  %637 = vmatpush1.msra.mxu0 0.0
  %638 = vmatprep.subr.mxu0 0.0
  %639 = vmatpush1.msra.mxu0 0.0
  %640 = vmatprep.subr.mxu0 0.0
  %641 = vmatpush1.msra.mxu0 0.0
  %642 = vmatprep.subr.mxu0 0.0
  %643 = vmatpush1.msra.mxu0 0.0
  %644 = vmatprep.subr.mxu0 0.0
  %645 = vmatpush1.msra.mxu0 0.0
  %646 = vmatprep.subr.mxu0 0.0
  %647 = vmatpush1.msra.mxu0 0.0
  %648 = vmatprep.subr.mxu0 0.0
  %649 = vmatpush1.msra.mxu0 0.0
  %650 = vmatprep.subr.mxu0 0.0
  %651 = vmatpush1.msra.mxu0 0.0
  %652 = vmatprep.subr.mxu0 0.0
  %653 = vmatpush1.msra.mxu0 0.0
  %654 = vmatprep.subr.mxu0 0.0
  %655 = vmatpush1.msra.mxu0 0.0
  %656 = vmatprep.subr.mxu0 0.0
  %657 = vmatpush1.msra.mxu0 0.0
  %658 = vmatprep.subr.mxu0 0.0
  %659 = vmatpush1.msra.mxu0 0.0
  %660 = vmatprep.subr.mxu0 0.0
  %661 = vmatpush1.msra.mxu0 0.0
  %662 = vmatprep.subr.mxu0 0.0
  %663 = vmatpush1.msra.mxu0 0.0
  %664 = vmatprep.subr.mxu0 0.0
  %665 = vmatpush1.msra.mxu0 0.0
  %666 = vmatprep.subr.mxu0 0.0
  %667 = vmatpush1.msra.mxu0 0.0
  %668 = vmatprep.subr.mxu0 0.0
  %669 = vmatpush1.msra.mxu0 0.0
  %670 = vmatprep.subr.mxu0 0.0
  %671 = vmatpush1.msra.mxu0 0.0
  %672 = vmatprep.subr.mxu0 0.0
  %673 = vmatpush1.msra.mxu0 0.0
  %674 = vmatprep.subr.mxu0 0.0
  %675 = vmatpush1.msra.mxu0 0.0
  %676 = vmatprep.subr.mxu0 0.0
  %677 = vmatpush1.msra.mxu0 0.0
  %678 = vmatprep.subr.mxu0 0.0
  %679 = vmatpush1.msra.mxu0 0.0
  %680 = vmatprep.subr.mxu0 0.0
  %681 = vmatpush1.msra.mxu0 0.0
  %682 = vmatprep.mubr.f32.mxu0 0.0
  %683 = vmatmul.mubr.f32.gmra.mrb[0].mxu0 %v595
  %v684 = vpop.f32.mrb[0].mxu0
  %v685 = vadd.f32 %v208, %v684
  %v686 = vpop.f32.mrb[0].mxu0
  %v687 = vadd.f32 %v210, %v686
  %688 = vmatprep.mubr.f32.mxu0 0.0
  %689 = vmatmul.mubr.f32.gmra.mrb[0].mxu0 %v598
  %v690 = vpop.f32.mrb[0].mxu0
  %v691 = vadd.f32 %v214, %v690
  %v692 = vpop.f32.mrb[0].mxu0
  %v693 = vadd.f32 %v216, %v692
  %694 = vmatprep.mubr.f32.mxu0 0.0
  %695 = vmatmul.mubr.f32.gmra.mrb[0].mxu0 %v601
  %v696 = vpop.f32.mrb[0].mxu0
  %v697 = vadd.f32 %v220, %v696
  %v698 = vpop.f32.mrb[0].mxu0
  %v699 = vadd.f32 %v222, %v698
  %700 = vmatprep.mubr.f32.mxu0 0.0
  %701 = vmatmul.mubr.f32.gmra.mrb[0].mxu0 %v604
  %v702 = vpop.f32.mrb[0].mxu0
  %v703 = vadd.f32 %v226, %v702
  %v704 = vpop.f32.mrb[0].mxu0
  %v705 = vadd.f32 %v228, %v704
  %706 = vmatprep.mubr.f32.mxu0 0.0
  %707 = vmatmul.mubr.f32.gmra.mrb[0].mxu0 %v607
  %v708 = vpop.f32.mrb[0].mxu0
  %v709 = vadd.f32 %v232, %v708
  %v710 = vpop.f32.mrb[0].mxu0
  %v711 = vadd.f32 %v234, %v710
  %712 = vmatprep.mubr.f32.mxu0 0.0
  %713 = vmatmul.mubr.f32.gmra.mrb[0].mxu0 %v610
  %v714 = vpop.f32.mrb[0].mxu0
  %v715 = vadd.f32 %v238, %v714
  %v716 = vpop.f32.mrb[0].mxu0
  %v717 = vadd.f32 %v240, %v716
  %718 = vmatprep.mubr.f32.mxu0 0.0
  %719 = vmatmul.mubr.f32.gmra.mrb[0].mxu0 %v613
  %v720 = vpop.f32.mrb[0].mxu0
  %v721 = vadd.f32 %v244, %v720
  %v722 = vpop.f32.mrb[0].mxu0
  %v723 = vadd.f32 %v246, %v722
  %724 = vmatprep.mubr.f32.mxu0 0.0
  %725 = vmatmul.mubr.f32.gmra.mrb[0].mxu0 %v616
  %v726 = vpop.f32.mrb[0].mxu0
  %v727 = vadd.f32 %v250, %v726
  %v728 = vpop.f32.mrb[0].mxu0
  %v729 = vadd.f32 %v252, %v728
  %730 = vdwg.mxu0
  %731 = vmatprep.subr.mxu0 %v31
  %732 = vmatpush1.msra.mxu0 %v30
  %733 = vmatprep.subr.mxu0 %v39
  %734 = vmatpush1.msra.mxu0 %v38
  %735 = vmatprep.subr.mxu0 %v47
  %736 = vmatpush1.msra.mxu0 %v46
  %737 = vmatprep.subr.mxu0 %v55
  %738 = vmatpush1.msra.mxu0 %v54
  %739 = vmatprep.subr.mxu0 %v63
  %740 = vmatpush1.msra.mxu0 %v62
  %741 = vmatprep.subr.mxu0 %v71
  %742 = vmatpush1.msra.mxu0 %v70
  %743 = vmatprep.subr.mxu0 %v79
  %744 = vmatpush1.msra.mxu0 %v78
  %745 = vmatprep.subr.mxu0 %v87
  %746 = vmatpush1.msra.mxu0 %v86
  %747 = vmatprep.subr.mxu0 0.0
  %748 = vmatpush1.msra.mxu0 0.0
  %749 = vmatprep.subr.mxu0 0.0
  %750 = vmatpush1.msra.mxu0 0.0
  %751 = vmatprep.subr.mxu0 0.0
  %752 = vmatpush1.msra.mxu0 0.0
  %753 = vmatprep.subr.mxu0 0.0
  %754 = vmatpush1.msra.mxu0 0.0
  %755 = vmatprep.subr.mxu0 0.0
  %756 = vmatpush1.msra.mxu0 0.0
  %757 = vmatprep.subr.mxu0 0.0
  %758 = vmatpush1.msra.mxu0 0.0
  %759 = vmatprep.subr.mxu0 0.0
  %760 = vmatpush1.msra.mxu0 0.0
  %761 = vmatprep.subr.mxu0 0.0
  %762 = vmatpush1.msra.mxu0 0.0
  %763 = vmatprep.subr.mxu0 0.0
  %764 = vmatpush1.msra.mxu0 0.0
  %765 = vmatprep.subr.mxu0 0.0
  %766 = vmatpush1.msra.mxu0 0.0
  %767 = vmatprep.subr.mxu0 0.0
  %768 = vmatpush1.msra.mxu0 0.0
  %769 = vmatprep.subr.mxu0 0.0
  %770 = vmatpush1.msra.mxu0 0.0
  %771 = vmatprep.subr.mxu0 0.0
  %772 = vmatpush1.msra.mxu0 0.0
  %773 = vmatprep.subr.mxu0 0.0
  %774 = vmatpush1.msra.mxu0 0.0
  %775 = vmatprep.subr.mxu0 0.0
  %776 = vmatpush1.msra.mxu0 0.0
  %777 = vmatprep.subr.mxu0 0.0
  %778 = vmatpush1.msra.mxu0 0.0
  %779 = vmatprep.subr.mxu0 0.0
  %780 = vmatpush1.msra.mxu0 0.0
  %781 = vmatprep.subr.mxu0 0.0
  %782 = vmatpush1.msra.mxu0 0.0
  %783 = vmatprep.subr.mxu0 0.0
  %784 = vmatpush1.msra.mxu0 0.0
  %785 = vmatprep.subr.mxu0 0.0
  %786 = vmatpush1.msra.mxu0 0.0
  %787 = vmatprep.subr.mxu0 0.0
  %788 = vmatpush1.msra.mxu0 0.0
  %789 = vmatprep.subr.mxu0 0.0
  %790 = vmatpush1.msra.mxu0 0.0
  %791 = vmatprep.subr.mxu0 0.0
  %792 = vmatpush1.msra.mxu0 0.0
  %793 = vmatprep.subr.mxu0 0.0
  %794 = vmatpush1.msra.mxu0 0.0
  %795 = vmatprep.mubr.f32.mxu0 0.0
  %796 = vmatmul.mubr.f32.gmra.mrb[0].mxu0 %v595
  %v797 = vpop.f32.mrb[0].mxu0
  %v798 = vadd.f32 %v321, %v797
  %v799 = vpop.f32.mrb[0].mxu0
  %v800 = vadd.f32 %v323, %v799
  %801 = vmatprep.mubr.f32.mxu0 0.0
  %802 = vmatmul.mubr.f32.gmra.mrb[0].mxu0 %v598
  %v803 = vpop.f32.mrb[0].mxu0
  %v804 = vadd.f32 %v327, %v803
  %v805 = vpop.f32.mrb[0].mxu0
  %v806 = vadd.f32 %v329, %v805
  %807 = vmatprep.mubr.f32.mxu0 0.0
  %808 = vmatmul.mubr.f32.gmra.mrb[0].mxu0 %v601
  %v809 = vpop.f32.mrb[0].mxu0
  %v810 = vadd.f32 %v333, %v809
  %v811 = vpop.f32.mrb[0].mxu0
  %v812 = vadd.f32 %v335, %v811
  %813 = vmatprep.mubr.f32.mxu0 0.0
  %814 = vmatmul.mubr.f32.gmra.mrb[0].mxu0 %v604
  %v815 = vpop.f32.mrb[0].mxu0
  %v816 = vadd.f32 %v339, %v815
  %v817 = vpop.f32.mrb[0].mxu0
  %v818 = vadd.f32 %v341, %v817
  %819 = vmatprep.mubr.f32.mxu0 0.0
  %820 = vmatmul.mubr.f32.gmra.mrb[0].mxu0 %v607
  %v821 = vpop.f32.mrb[0].mxu0
  %v822 = vadd.f32 %v345, %v821
  %v823 = vpop.f32.mrb[0].mxu0
  %v824 = vadd.f32 %v347, %v823
  %825 = vmatprep.mubr.f32.mxu0 0.0
  %826 = vmatmul.mubr.f32.gmra.mrb[0].mxu0 %v610
  %v827 = vpop.f32.mrb[0].mxu0
  %v828 = vadd.f32 %v351, %v827
  %v829 = vpop.f32.mrb[0].mxu0
  %v830 = vadd.f32 %v353, %v829
  %831 = vmatprep.mubr.f32.mxu0 0.0
  %832 = vmatmul.mubr.f32.gmra.mrb[0].mxu0 %v613
  %v833 = vpop.f32.mrb[0].mxu0
  %v834 = vadd.f32 %v357, %v833
  %v835 = vpop.f32.mrb[0].mxu0
  %v836 = vadd.f32 %v359, %v835
  %837 = vmatprep.mubr.f32.mxu0 0.0
  %838 = vmatmul.mubr.f32.gmra.mrb[0].mxu0 %v616
  %v839 = vpop.f32.mrb[0].mxu0
  %v840 = vadd.f32 %v363, %v839
  %v841 = vpop.f32.mrb[0].mxu0
  %v842 = vadd.f32 %v365, %v841
  %843 = vdwg.mxu0
  %844 = vmatprep.subr.mxu0 %v33
  %845 = vmatpush1.msra.mxu0 %v32
  %846 = vmatprep.subr.mxu0 %v41
  %847 = vmatpush1.msra.mxu0 %v40
  %848 = vmatprep.subr.mxu0 %v49
  %849 = vmatpush1.msra.mxu0 %v48
  %850 = vmatprep.subr.mxu0 %v57
  %851 = vmatpush1.msra.mxu0 %v56
  %852 = vmatprep.subr.mxu0 %v65
  %853 = vmatpush1.msra.mxu0 %v64
  %854 = vmatprep.subr.mxu0 %v73
  %855 = vmatpush1.msra.mxu0 %v72
  %856 = vmatprep.subr.mxu0 %v81
  %857 = vmatpush1.msra.mxu0 %v80
  %858 = vmatprep.subr.mxu0 %v89
  %859 = vmatpush1.msra.mxu0 %v88
  %860 = vmatprep.subr.mxu0 0.0
  %861 = vmatpush1.msra.mxu0 0.0
  %862 = vmatprep.subr.mxu0 0.0
  %863 = vmatpush1.msra.mxu0 0.0
  %864 = vmatprep.subr.mxu0 0.0
  %865 = vmatpush1.msra.mxu0 0.0
  %866 = vmatprep.subr.mxu0 0.0
  %867 = vmatpush1.msra.mxu0 0.0
  %868 = vmatprep.subr.mxu0 0.0
  %869 = vmatpush1.msra.mxu0 0.0
  %870 = vmatprep.subr.mxu0 0.0
  %871 = vmatpush1.msra.mxu0 0.0
  %872 = vmatprep.subr.mxu0 0.0
  %873 = vmatpush1.msra.mxu0 0.0
  %874 = vmatprep.subr.mxu0 0.0
  %875 = vmatpush1.msra.mxu0 0.0
  %876 = vmatprep.subr.mxu0 0.0
  %877 = vmatpush1.msra.mxu0 0.0
  %878 = vmatprep.subr.mxu0 0.0
  %879 = vmatpush1.msra.mxu0 0.0
  %880 = vmatprep.subr.mxu0 0.0
  %881 = vmatpush1.msra.mxu0 0.0
  %882 = vmatprep.subr.mxu0 0.0
  %883 = vmatpush1.msra.mxu0 0.0
  %884 = vmatprep.subr.mxu0 0.0
  %885 = vmatpush1.msra.mxu0 0.0
  %886 = vmatprep.subr.mxu0 0.0
  %887 = vmatpush1.msra.mxu0 0.0
  %888 = vmatprep.subr.mxu0 0.0
  %889 = vmatpush1.msra.mxu0 0.0
  %890 = vmatprep.subr.mxu0 0.0
  %891 = vmatpush1.msra.mxu0 0.0
  %892 = vmatprep.subr.mxu0 0.0
  %893 = vmatpush1.msra.mxu0 0.0
  %894 = vmatprep.subr.mxu0 0.0
  %895 = vmatpush1.msra.mxu0 0.0
  %896 = vmatprep.subr.mxu0 0.0
  %897 = vmatpush1.msra.mxu0 0.0
  %898 = vmatprep.subr.mxu0 0.0
  %899 = vmatpush1.msra.mxu0 0.0
  %900 = vmatprep.subr.mxu0 0.0
  %901 = vmatpush1.msra.mxu0 0.0
  %902 = vmatprep.subr.mxu0 0.0
  %903 = vmatpush1.msra.mxu0 0.0
  %904 = vmatprep.subr.mxu0 0.0
  %905 = vmatpush1.msra.mxu0 0.0
  %906 = vmatprep.subr.mxu0 0.0
  %907 = vmatpush1.msra.mxu0 0.0
  %908 = vmatprep.mubr.f32.mxu0 0.0
  %909 = vmatmul.mubr.f32.gmra.mrb[0].mxu0 %v595
  %v910 = vpop.f32.mrb[0].mxu0
  %v911 = vadd.f32 %v434, %v910
  %v912 = vpop.f32.mrb[0].mxu0
  %v913 = vadd.f32 %v436, %v912
  %914 = vmatprep.mubr.f32.mxu0 0.0
  %915 = vmatmul.mubr.f32.gmra.mrb[0].mxu0 %v598
  %v916 = vpop.f32.mrb[0].mxu0
  %v917 = vadd.f32 %v440, %v916
  %v918 = vpop.f32.mrb[0].mxu0
  %v919 = vadd.f32 %v442, %v918
  %920 = vmatprep.mubr.f32.mxu0 0.0
  %921 = vmatmul.mubr.f32.gmra.mrb[0].mxu0 %v601
  %v922 = vpop.f32.mrb[0].mxu0
  %v923 = vadd.f32 %v446, %v922
  %v924 = vpop.f32.mrb[0].mxu0
  %v925 = vadd.f32 %v448, %v924
  %926 = vmatprep.mubr.f32.mxu0 0.0
  %927 = vmatmul.mubr.f32.gmra.mrb[0].mxu0 %v604
  %v928 = vpop.f32.mrb[0].mxu0
  %v929 = vadd.f32 %v452, %v928
  %v930 = vpop.f32.mrb[0].mxu0
  %v931 = vadd.f32 %v454, %v930
  %932 = vmatprep.mubr.f32.mxu0 0.0
  %933 = vmatmul.mubr.f32.gmra.mrb[0].mxu0 %v607
  %v934 = vpop.f32.mrb[0].mxu0
  %v935 = vadd.f32 %v458, %v934
  %v936 = vpop.f32.mrb[0].mxu0
  %v937 = vadd.f32 %v460, %v936
  %938 = vmatprep.mubr.f32.mxu0 0.0
  %939 = vmatmul.mubr.f32.gmra.mrb[0].mxu0 %v610
  %v940 = vpop.f32.mrb[0].mxu0
  %v941 = vadd.f32 %v464, %v940
  %v942 = vpop.f32.mrb[0].mxu0
  %v943 = vadd.f32 %v466, %v942
  %944 = vmatprep.mubr.f32.mxu0 0.0
  %945 = vmatmul.mubr.f32.gmra.mrb[0].mxu0 %v613
  %v946 = vpop.f32.mrb[0].mxu0
  %v947 = vadd.f32 %v470, %v946
  %v948 = vpop.f32.mrb[0].mxu0
  %v949 = vadd.f32 %v472, %v948
  %950 = vmatprep.mubr.f32.mxu0 0.0
  %951 = vmatmul.mubr.f32.gmra.mrb[0].mxu0 %v616
  %v952 = vpop.f32.mrb[0].mxu0
  %v953 = vadd.f32 %v476, %v952
  %v954 = vpop.f32.mrb[0].mxu0
  %v955 = vadd.f32 %v478, %v954
  %956 = vdwg.mxu0
  %957 = vmatprep.subr.mxu0 %v35
  %958 = vmatpush1.msra.mxu0 %v34
  %959 = vmatprep.subr.mxu0 %v43
  %960 = vmatpush1.msra.mxu0 %v42
  %961 = vmatprep.subr.mxu0 %v51
  %962 = vmatpush1.msra.mxu0 %v50
  %963 = vmatprep.subr.mxu0 %v59
  %964 = vmatpush1.msra.mxu0 %v58
  %965 = vmatprep.subr.mxu0 %v67
  %966 = vmatpush1.msra.mxu0 %v66
  %967 = vmatprep.subr.mxu0 %v75
  %968 = vmatpush1.msra.mxu0 %v74
  %969 = vmatprep.subr.mxu0 %v83
  %970 = vmatpush1.msra.mxu0 %v82
  %971 = vmatprep.subr.mxu0 %v91
  %972 = vmatpush1.msra.mxu0 %v90
  %973 = vmatprep.subr.mxu0 0.0
  %974 = vmatpush1.msra.mxu0 0.0
  %975 = vmatprep.subr.mxu0 0.0
  %976 = vmatpush1.msra.mxu0 0.0
  %977 = vmatprep.subr.mxu0 0.0
  %978 = vmatpush1.msra.mxu0 0.0
  %979 = vmatprep.subr.mxu0 0.0
  %980 = vmatpush1.msra.mxu0 0.0
  %981 = vmatprep.subr.mxu0 0.0
  %982 = vmatpush1.msra.mxu0 0.0
  %983 = vmatprep.subr.mxu0 0.0
  %984 = vmatpush1.msra.mxu0 0.0
  %985 = vmatprep.subr.mxu0 0.0
  %986 = vmatpush1.msra.mxu0 0.0
  %987 = vmatprep.subr.mxu0 0.0
  %988 = vmatpush1.msra.mxu0 0.0
  %989 = vmatprep.subr.mxu0 0.0
  %990 = vmatpush1.msra.mxu0 0.0
  %991 = vmatprep.subr.mxu0 0.0
  %992 = vmatpush1.msra.mxu0 0.0
  %993 = vmatprep.subr.mxu0 0.0
  %994 = vmatpush1.msra.mxu0 0.0
  %995 = vmatprep.subr.mxu0 0.0
  %996 = vmatpush1.msra.mxu0 0.0
  %997 = vmatprep.subr.mxu0 0.0
  %998 = vmatpush1.msra.mxu0 0.0
  %999 = vmatprep.subr.mxu0 0.0
  %1000 = vmatpush1.msra.mxu0 0.0
  %1001 = vmatprep.subr.mxu0 0.0
  %1002 = vmatpush1.msra.mxu0 0.0
  %1003 = vmatprep.subr.mxu0 0.0
  %1004 = vmatpush1.msra.mxu0 0.0
  %1005 = vmatprep.subr.mxu0 0.0
  %1006 = vmatpush1.msra.mxu0 0.0
  %1007 = vmatprep.subr.mxu0 0.0
  %1008 = vmatpush1.msra.mxu0 0.0
  %1009 = vmatprep.subr.mxu0 0.0
  %1010 = vmatpush1.msra.mxu0 0.0
  %1011 = vmatprep.subr.mxu0 0.0
  %1012 = vmatpush1.msra.mxu0 0.0
  %1013 = vmatprep.subr.mxu0 0.0
  %1014 = vmatpush1.msra.mxu0 0.0
  %1015 = vmatprep.subr.mxu0 0.0
  %1016 = vmatpush1.msra.mxu0 0.0
  %1017 = vmatprep.subr.mxu0 0.0
  %1018 = vmatpush1.msra.mxu0 0.0
  %1019 = vmatprep.subr.mxu0 0.0
  %1020 = vmatpush1.msra.mxu0 0.0
  %1021 = vmatprep.mubr.f32.mxu0 0.0
  %1022 = vmatmul.mubr.f32.gmra.mrb[0].mxu0 %v595
  %v1023 = vpop.f32.mrb[0].mxu0
  %v1024 = vadd.f32 %v547, %v1023
  %v1025 = vpop.f32.mrb[0].mxu0
  %v1026 = vadd.f32 %v549, %v1025
  %1027 = vmatprep.mubr.f32.mxu0 0.0
  %1028 = vmatmul.mubr.f32.gmra.mrb[0].mxu0 %v598
  %v1029 = vpop.f32.mrb[0].mxu0
  %v1030 = vadd.f32 %v553, %v1029
  %v1031 = vpop.f32.mrb[0].mxu0
  %v1032 = vadd.f32 %v555, %v1031
  %1033 = vmatprep.mubr.f32.mxu0 0.0
  %1034 = vmatmul.mubr.f32.gmra.mrb[0].mxu0 %v601
  %v1035 = vpop.f32.mrb[0].mxu0
  %v1036 = vadd.f32 %v559, %v1035
  %v1037 = vpop.f32.mrb[0].mxu0
  %v1038 = vadd.f32 %v561, %v1037
  %1039 = vmatprep.mubr.f32.mxu0 0.0
  %1040 = vmatmul.mubr.f32.gmra.mrb[0].mxu0 %v604
  %v1041 = vpop.f32.mrb[0].mxu0
  %v1042 = vadd.f32 %v565, %v1041
  %v1043 = vpop.f32.mrb[0].mxu0
  %v1044 = vadd.f32 %v567, %v1043
  %1045 = vmatprep.mubr.f32.mxu0 0.0
  %1046 = vmatmul.mubr.f32.gmra.mrb[0].mxu0 %v607
  %v1047 = vpop.f32.mrb[0].mxu0
  %v1048 = vadd.f32 %v571, %v1047
  %v1049 = vpop.f32.mrb[0].mxu0
  %v1050 = vadd.f32 %v573, %v1049
  %1051 = vmatprep.mubr.f32.mxu0 0.0
  %1052 = vmatmul.mubr.f32.gmra.mrb[0].mxu0 %v610
  %v1053 = vpop.f32.mrb[0].mxu0
  %v1054 = vadd.f32 %v577, %v1053
  %v1055 = vpop.f32.mrb[0].mxu0
  %v1056 = vadd.f32 %v579, %v1055
  %1057 = vmatprep.mubr.f32.mxu0 0.0
  %1058 = vmatmul.mubr.f32.gmra.mrb[0].mxu0 %v613
  %v1059 = vpop.f32.mrb[0].mxu0
  %v1060 = vadd.f32 %v583, %v1059
  %v1061 = vpop.f32.mrb[0].mxu0
  %v1062 = vadd.f32 %v585, %v1061
  %1063 = vmatprep.mubr.f32.mxu0 0.0
  %1064 = vmatmul.mubr.f32.gmra.mrb[0].mxu0 %v616
  %v1065 = vpop.f32.mrb[0].mxu0
  %v1066 = vadd.f32 %v589, %v1065
  %v1067 = vpop.f32.mrb[0].mxu0
  %v1068 = vadd.f32 %v591, %v1067
  %1069 = vdwg.mxu0
  %v1070 = vld [vmem:[%s4] sm:$0xff]
  %v1071 = vld [vmem:[%s4 + $0x8] sm:$0xff]
  %v1072 = vld [vmem:[%s4 + $0x10] sm:$0xff]
  %v1073 = vld [vmem:[%s4 + $0x18] sm:$0xff]
  %v1074 = vld [vmem:[%s4 + $0x20] sm:$0xff]
  %v1075 = vld [vmem:[%s4 + $0x28] sm:$0xff]
  %v1076 = vld [vmem:[%s4 + $0x30] sm:$0xff]
  %v1077 = vld [vmem:[%s4 + $0x38] sm:$0xff]
  %1079 = vset.pattern.permute.xlu0 0
  %1080 = vperm.xlu0 %1079, %v1070
  %v1081 = vpop.permute.xlu0 %1080
  %1084 = vset.pattern.permute.xlu0 0
  %1085 = vperm.xlu0 %1084, %v1071
  %v1086 = vpop.permute.xlu0 %1085
  %1089 = vset.pattern.permute.xlu0 0
  %1090 = vperm.xlu0 %1089, %v1072
  %v1091 = vpop.permute.xlu0 %1090
  %1094 = vset.pattern.permute.xlu0 0
  %1095 = vperm.xlu0 %1094, %v1073
  %v1096 = vpop.permute.xlu0 %1095
  %1099 = vset.pattern.permute.xlu0 0
  %1100 = vperm.xlu0 %1099, %v1074
  %v1101 = vpop.permute.xlu0 %1100
  %1104 = vset.pattern.permute.xlu0 0
  %1105 = vperm.xlu0 %1104, %v1075
  %v1106 = vpop.permute.xlu0 %1105
  %1109 = vset.pattern.permute.xlu0 0
  %1110 = vperm.xlu0 %1109, %v1076
  %v1111 = vpop.permute.xlu0 %1110
  %1114 = vset.pattern.permute.xlu0 0
  %1115 = vperm.xlu0 %1114, %v1077
  %v1116 = vpop.permute.xlu0 %1115
  %v1118 = vadd.f32 %v685, %v1081
  %v1119 = vadd.f32 %v687, %v1081
  %v1120 = vadd.f32 %v798, %v1081
  %v1121 = vadd.f32 %v800, %v1081
  %v1122 = vadd.f32 %v911, %v1081
  %v1123 = vadd.f32 %v913, %v1081
  %v1124 = vadd.f32 %v1024, %v1081
  %v1125 = vadd.f32 %v1026, %v1081
  %v1126 = vadd.f32 %v691, %v1086
  %v1127 = vadd.f32 %v693, %v1086
  %v1128 = vadd.f32 %v804, %v1086
  %v1129 = vadd.f32 %v806, %v1086
  %v1130 = vadd.f32 %v917, %v1086
  %v1131 = vadd.f32 %v919, %v1086
  %v1132 = vadd.f32 %v1030, %v1086
  %v1133 = vadd.f32 %v1032, %v1086
  %v1134 = vadd.f32 %v697, %v1091
  %v1135 = vadd.f32 %v699, %v1091
  %v1136 = vadd.f32 %v810, %v1091
  %v1137 = vadd.f32 %v812, %v1091
  %v1138 = vadd.f32 %v923, %v1091
  %v1139 = vadd.f32 %v925, %v1091
  %v1140 = vadd.f32 %v1036, %v1091
  %v1141 = vadd.f32 %v1038, %v1091
  %v1142 = vadd.f32 %v703, %v1096
  %v1143 = vadd.f32 %v705, %v1096
  %v1144 = vadd.f32 %v816, %v1096
  %v1145 = vadd.f32 %v818, %v1096
  %v1146 = vadd.f32 %v929, %v1096
  %v1147 = vadd.f32 %v931, %v1096
  %v1148 = vadd.f32 %v1042, %v1096
  %v1149 = vadd.f32 %v1044, %v1096
  %v1150 = vadd.f32 %v709, %v1101
  %v1151 = vadd.f32 %v711, %v1101
  %v1152 = vadd.f32 %v822, %v1101
  %v1153 = vadd.f32 %v824, %v1101
  %v1154 = vadd.f32 %v935, %v1101
  %v1155 = vadd.f32 %v937, %v1101
  %v1156 = vadd.f32 %v1048, %v1101
  %v1157 = vadd.f32 %v1050, %v1101
  %v1158 = vadd.f32 %v715, %v1106
  %v1159 = vadd.f32 %v717, %v1106
  %v1160 = vadd.f32 %v828, %v1106
  %v1161 = vadd.f32 %v830, %v1106
  %v1162 = vadd.f32 %v941, %v1106
  %v1163 = vadd.f32 %v943, %v1106
  %v1164 = vadd.f32 %v1054, %v1106
  %v1165 = vadd.f32 %v1056, %v1106
  %v1166 = vadd.f32 %v721, %v1111
  %v1167 = vadd.f32 %v723, %v1111
  %v1168 = vadd.f32 %v834, %v1111
  %v1169 = vadd.f32 %v836, %v1111
  %v1170 = vadd.f32 %v947, %v1111
  %v1171 = vadd.f32 %v949, %v1111
  %v1172 = vadd.f32 %v1060, %v1111
  %v1173 = vadd.f32 %v1062, %v1111
  %v1174 = vadd.f32 %v727, %v1116
  %v1175 = vadd.f32 %v729, %v1116
  %v1176 = vadd.f32 %v840, %v1116
  %v1177 = vadd.f32 %v842, %v1116
  %v1178 = vadd.f32 %v953, %v1116
  %v1179 = vadd.f32 %v955, %v1116
  %v1180 = vadd.f32 %v1066, %v1116
  %v1181 = vadd.f32 %v1068, %v1116
  %1182 = vst [vmem:[%s5] sm:$0xff] %v1118
  %1183 = vst [vmem:[%s5 + $0x8] sm:$0xff] %v1119
  %1184 = vst [vmem:[%s5 + $0x10] sm:$0xff] %v1120
  %1185 = vst [vmem:[%s5 + $0x18] sm:$0xff] %v1121
  %1186 = vst [vmem:[%s5 + $0x20] sm:$0xff] %v1122
  %1187 = vst [vmem:[%s5 + $0x28] sm:$0xff] %v1123
  %1188 = vst [vmem:[%s5 + $0x30] sm:$0xff] %v1124
  %1189 = vst [vmem:[%s5 + $0x38] sm:$0xff] %v1125
  %1190 = vst [vmem:[%s5 + $0x40] sm:$0xff] %v1126
  %1191 = vst [vmem:[%s5 + $0x48] sm:$0xff] %v1127
  %1192 = vst [vmem:[%s5 + $0x50] sm:$0xff] %v1128
  %1193 = vst [vmem:[%s5 + $0x58] sm:$0xff] %v1129
  %1194 = vst [vmem:[%s5 + $0x60] sm:$0xff] %v1130
  %1195 = vst [vmem:[%s5 + $0x68] sm:$0xff] %v1131
  %1196 = vst [vmem:[%s5 + $0x70] sm:$0xff] %v1132
  %1197 = vst [vmem:[%s5 + $0x78] sm:$0xff] %v1133
  %1198 = vst [vmem:[%s5 + $0x80] sm:$0xff] %v1134
  %1199 = vst [vmem:[%s5 + $0x88] sm:$0xff] %v1135
  %1200 = vst [vmem:[%s5 + $0x90] sm:$0xff] %v1136
  %1201 = vst [vmem:[%s5 + $0x98] sm:$0xff] %v1137
  %1202 = vst [vmem:[%s5 + $0xa0] sm:$0xff] %v1138
  %1203 = vst [vmem:[%s5 + $0xa8] sm:$0xff] %v1139
  %1204 = vst [vmem:[%s5 + $0xb0] sm:$0xff] %v1140
  %1205 = vst [vmem:[%s5 + $0xb8] sm:$0xff] %v1141
  %1206 = vst [vmem:[%s5 + $0xc0] sm:$0xff] %v1142
  %1207 = vst [vmem:[%s5 + $0xc8] sm:$0xff] %v1143
  %1208 = vst [vmem:[%s5 + $0xd0] sm:$0xff] %v1144
  %1209 = vst [vmem:[%s5 + $0xd8] sm:$0xff] %v1145
  %1210 = vst [vmem:[%s5 + $0xe0] sm:$0xff] %v1146
  %1211 = vst [vmem:[%s5 + $0xe8] sm:$0xff] %v1147
  %1212 = vst [vmem:[%s5 + $0xf0] sm:$0xff] %v1148
  %1213 = vst [vmem:[%s5 + $0xf8] sm:$0xff] %v1149
  %1214 = vst [vmem:[%s5 + $0x100] sm:$0xff] %v1150
  %1215 = vst [vmem:[%s5 + $0x108] sm:$0xff] %v1151
  %1216 = vst [vmem:[%s5 + $0x110] sm:$0xff] %v1152
  %1217 = vst [vmem:[%s5 + $0x118] sm:$0xff] %v1153
  %1218 = vst [vmem:[%s5 + $0x120] sm:$0xff] %v1154
  %1219 = vst [vmem:[%s5 + $0x128] sm:$0xff] %v1155
  %1220 = vst [vmem:[%s5 + $0x130] sm:$0xff] %v1156
  %1221 = vst [vmem:[%s5 + $0x138] sm:$0xff] %v1157
  %1222 = vst [vmem:[%s5 + $0x140] sm:$0xff] %v1158
  %1223 = vst [vmem:[%s5 + $0x148] sm:$0xff] %v1159
  %1224 = vst [vmem:[%s5 + $0x150] sm:$0xff] %v1160
  %1225 = vst [vmem:[%s5 + $0x158] sm:$0xff] %v1161
  %1226 = vst [vmem:[%s5 + $0x160] sm:$0xff] %v1162
  %1227 = vst [vmem:[%s5 + $0x168] sm:$0xff] %v1163
  %1228 = vst [vmem:[%s5 + $0x170] sm:$0xff] %v1164
  %1229 = vst [vmem:[%s5 + $0x178] sm:$0xff] %v1165
  %1230 = vst [vmem:[%s5 + $0x180] sm:$0xff] %v1166
  %1231 = vst [vmem:[%s5 + $0x188] sm:$0xff] %v1167
  %1232 = vst [vmem:[%s5 + $0x190] sm:$0xff] %v1168
  %1233 = vst [vmem:[%s5 + $0x198] sm:$0xff] %v1169
  %1234 = vst [vmem:[%s5 + $0x1a0] sm:$0xff] %v1170
  %1235 = vst [vmem:[%s5 + $0x1a8] sm:$0xff] %v1171
  %1236 = vst [vmem:[%s5 + $0x1b0] sm:$0xff] %v1172
  %1237 = vst [vmem:[%s5 + $0x1b8] sm:$0xff] %v1173
  %1238 = vst [vmem:[%s5 + $0x1c0] sm:$0xff] %v1174
  %1239 = vst [vmem:[%s5 + $0x1c8] sm:$0xff] %v1175
  %1240 = vst [vmem:[%s5 + $0x1d0] sm:$0xff] %v1176
  %1241 = vst [vmem:[%s5 + $0x1d8] sm:$0xff] %v1177
  %1242 = vst [vmem:[%s5 + $0x1e0] sm:$0xff] %v1178
  %1243 = vst [vmem:[%s5 + $0x1e8] sm:$0xff] %v1179
  %1244 = vst [vmem:[%s5 + $0x1f0] sm:$0xff] %v1180
  %1245 = vst [vmem:[%s5 + $0x1f8] sm:$0xff] %v1181
  // Predicated region
  $region22: #{deup_cat_forward.1} parent=0 // pred_check
    _
  $region23: #{deup_cat_forward.1} parent=0 // pred_check_branch
    %1247 = sbr.rel (0) target = $region25
  $region24: #{deup_cat_forward.1} parent=0 // pred_region
    _
  $region25: #{deup_cat_forward.1} parent=0 // pred_fallthru
    _
  // Predicated region
  $region26: #{deup_cat_forward.1} parent=0 // pred_check
    _
  $region27: #{deup_cat_forward.1} parent=0 // pred_check_branch
    %1249 = sbr.rel (0) target = $region29
  $region28: #{deup_cat_forward.1} parent=0 // pred_region
    _
  $region29: #{deup_cat_forward.1} parent=0 // pred_fallthru
    _

</llo_original>
